<compile_context>
chip_gen: v5e
topology: v5e:2x2
jax: 0.10.0
libtpu: 0.0.40
codegen_flags: <defaults>
</compile_context>

<pallas_src>
import functools

import jax
import jax.numpy as jnp
from jax.experimental import pallas as pl
from jax.experimental.pallas import tpu as pltpu


def _cdiv(a, b):
    return -(-a // b)


def _gcn_head_kernel(x_ref, wm_ref, bm_ref, w1_ref, b1_ref, w2_ref, b2_ref, o_ref,
                     *, n_nodes):
    # x_ref:  (1, TB, N, 768) f32  — TB documents' BERT pooled sentence embeddings
    # o_ref:  (1, TB, C_PAD) f32   — lane-dense per-document logits slab
    x = x_ref[0]                                                       # (TB, N, 768) f32

    # Complete-graph A_hat == ones/N  =>  A_hat @ Z == per-document node mean of Z.
    # Mean-before-matmul (exact by linearity): reduce x over the node axis first.
    xm = jnp.sum(x, axis=1) * (1.0 / n_nodes)                          # (TB, 768) f32

    # Mapping Linear(768 -> 128) applied to the node-mean (tiny MXU matmul, f32 acc).
    hm = jnp.dot(xm, wm_ref[...], preferred_element_type=jnp.float32) + bm_ref[...]

    # GCN layer 1: every node row of H1 is identical -> keep one row per document.
    r1 = jnp.maximum(
        jnp.dot(hm, w1_ref[...], preferred_element_type=jnp.float32) + b1_ref[...],
        0.0)                                                           # (TB, 32) f32

    # GCN layer 2 + node-sum readout: sum_n(A_hat @ (H1 W2) + b2) == N * (r1 @ W2 + b2).
    logits = float(n_nodes) * (
        jnp.dot(r1, w2_ref[...], preferred_element_type=jnp.float32) + b2_ref[...])

    o_ref[0] = logits                                                  # (TB, C_PAD) f32


def _tpu_generation_params():
    """Best-effort, generation-aware tiling knobs.  Falls back conservatively."""
    kind = ""
    try:
        dev = jax.devices()[0]
        if dev.platform == "tpu":
            kind = dev.device_kind.lower()
    except Exception:
        pass
    if "v7" in kind:
        # 2 TensorCores share the grid; 64 MiB physical / 32 MiB scoped VMEM.
        return dict(n_cores=2, x_block_budget=20 << 20)
    if "v6" in kind or "v5e" in kind or "v5 lite" in kind or "v5lite" in kind:
        # Single TensorCore, 128 MiB VMEM: prefer one big tile, no forced split.
        return dict(n_cores=1, x_block_budget=40 << 20)
    # Unknown chip: conservative budget, no forced split.
    return dict(n_cores=1, x_block_budget=12 << 20)


def _choose_batch_tile(batch, n_nodes, feat, *, n_cores, x_block_budget):
    """Pick (TB, grid) s.t. the double-buffered f32 x block fits the budget and the
    grid is a multiple of the number of TensorCores (so no core idles on v7x)."""
    bytes_per_doc = n_nodes * feat * 4                       # f32
    tb_cap = max(1, x_block_budget // (2 * bytes_per_doc))   # 2x for double buffering
    min_steps = max(n_cores, _cdiv(batch, tb_cap))
    if n_cores > 1:
        min_steps = n_cores * _cdiv(min_steps, n_cores)
    tb = max(1, _cdiv(batch, min_steps))
    grid = _cdiv(batch, tb)
    if n_cores > 1 and grid % n_cores:
        grid = n_cores * _cdiv(grid, n_cores)
    return tb, grid


def hi_bert_gcn_forward(sent_bert, wm, bm, w1, b1, w2, b2, *, batch_tile=None):
    """Post-BERT GCN classification head (adj_method='complete'). Returns [B, num_class]."""
    B, N, F = sent_bert.shape
    h_map = wm.shape[1]
    h_gcn = w1.shape[1]
    C = w2.shape[1]
    c_pad = ((C + 127) // 128) * 128          # lane-dense output slab

    params = _tpu_generation_params()
    if batch_tile is not None:
        tb = batch_tile
        grid = _cdiv(B, tb)
    else:
        tb, grid = _choose_batch_tile(B, N, F, **params)

    # Pad batch up to a multiple of the tile (handles prime/odd B without TB=1 fallback).
    b_pad = tb * grid
    x = sent_bert.astype(jnp.float32)
    if b_pad != B:
        x = jnp.pad(x, ((0, b_pad - B), (0, 0), (0, 0)))
    x = x.reshape(grid, tb, N, F)             # metadata-only reshape (no copy)

    # Lane-pad the classifier weights so the output slab stores are unmasked.
    w2_p = jnp.pad(w2.astype(jnp.float32), ((0, 0), (0, c_pad - C)))
    b2_p = jnp.pad(b2.astype(jnp.float32), ((0, 0), (0, c_pad - C)))

    # Raise scoped VMEM only if the chosen block actually needs more than the smallest
    # per-generation default (16 MiB on v5e).
    x_block_bytes = tb * N * F * 4
    weight_bytes = (F * h_map + h_map + h_map * h_gcn + h_gcn + h_gcn * c_pad + c_pad) * 4
    out_block_bytes = tb * c_pad * 4
    vmem_needed = 2 * (x_block_bytes + weight_bytes + out_block_bytes) + (2 << 20)
    cp_kwargs = dict(dimension_semantics=("parallel",))
    if vmem_needed > (16 << 20):
        cp_kwargs["vmem_limit_bytes"] = int(vmem_needed)

    kernel = functools.partial(_gcn_head_kernel, n_nodes=N)
    out = pl.pallas_call(
        kernel,
        out_shape=jax.ShapeDtypeStruct((grid, tb, c_pad), jnp.float32),
        grid=(grid,),
        in_specs=[
            pl.BlockSpec((1, tb, N, F), lambda g: (g, 0, 0, 0)),   # x: one TB-document tile
            pl.BlockSpec((F, h_map), lambda g: (0, 0)),            # Wm (resident)
            pl.BlockSpec((1, h_map), lambda g: (0, 0)),            # bm
            pl.BlockSpec((h_map, h_gcn), lambda g: (0, 0)),        # W1
            pl.BlockSpec((1, h_gcn), lambda g: (0, 0)),            # b1
            pl.BlockSpec((h_gcn, c_pad), lambda g: (0, 0)),        # W2 (lane-padded)
            pl.BlockSpec((1, c_pad), lambda g: (0, 0)),            # b2 (lane-padded)
        ],
        out_specs=pl.BlockSpec((1, tb, c_pad), lambda g: (g, 0, 0)),
        compiler_params=pltpu.CompilerParams(**cp_kwargs),
    )(x, wm.astype(jnp.float32), bm.astype(jnp.float32),
      w1.astype(jnp.float32), b1.astype(jnp.float32), w2_p, b2_p)

    return out.reshape(b_pad, c_pad)[:B, :C]


def reference_forward(sent_bert, a_hat, wm, bm, w1, b1, w2, b2):
    """Pure-JAX reference (general dense normalized adjacency)."""
    h = jnp.einsum("bnf,fh->bnh", sent_bert, wm) + bm                      # mapping
    h1 = jnp.maximum(jnp.einsum("mn,bnh->bmh", a_hat, h @ w1) + b1, 0.0)   # GCN 1
    h2 = jnp.einsum("mn,bnh->bmh", a_hat, h1 @ w2) + b2                    # GCN 2
    return jnp.sum(h2, axis=1)                                             # node-sum readout


if __name__ == "__main__":
    # Small shapes consistent with the module.
    B = 8            # batch size (documents)
    N = 8            # sentence-nodes per document
    F_BERT = 768     # BERT pooled output dim
    H_MAP = 128      # self.lstm_hidden_size (mapping output / GCN input)
    H_GCN = 32       # GCN hidden_dim
    C = 4            # num_class

    key = jax.random.PRNGKey(0)
    kx, kwm, kbm, kw1, kb1, kw2, kb2 = jax.random.split(key, 7)

    # Synthetic BERT pooled outputs (stand-in for the pretrained BERT encoder).
    sent_bert = jax.random.normal(kx, (B, N, F_BERT), dtype=jnp.float32)

    # Deterministic parameters (shapes from __init__).
    wm = jax.random.normal(kwm, (F_BERT, H_MAP), dtype=jnp.float32) * 0.02
    bm = jax.random.normal(kbm, (1, H_MAP), dtype=jnp.float32) * 0.02
    w1 = jax.random.normal(kw1, (H_MAP, H_GCN), dtype=jnp.float32) * 0.1
    b1 = jax.random.normal(kb1, (1, H_GCN), dtype=jnp.float32) * 0.1
    w2 = jax.random.normal(kw2, (H_GCN, C), dtype=jnp.float32) * 0.1
    b2 = jax.random.normal(kb2, (1, C), dtype=jnp.float32) * 0.1

    # Reference: explicit normalized complete-graph adjacency (== 1/N everywhere).
    adj = jnp.ones((N, N), dtype=jnp.float32)
    d_inv_sqrt = 1.0 / jnp.sqrt(jnp.sum(adj, axis=1))
    a_hat = adj * d_inv_sqrt[:, None] * d_inv_sqrt[None, :]

    out = hi_bert_gcn_forward(sent_bert, wm, bm, w1, b1, w2, b2)
    out = jax.block_until_ready(out)
    ref = reference_forward(sent_bert, a_hat, wm, bm, w1, b1, w2, b2)
    assert out.shape == (B, C), out.shape
    assert jnp.allclose(out, ref, atol=1e-2, rtol=1e-2), (out, ref)

    # Also exercise the non-divisor batch path (B padded up to a tile multiple).
    B2 = 5
    sb2 = sent_bert[:B2]
    out2 = hi_bert_gcn_forward(sb2, wm, bm, w1, b1, w2, b2)
    out2 = jax.block_until_ready(out2)
    ref2 = reference_forward(sb2, a_hat, wm, bm, w1, b1, w2, b2)
    assert out2.shape == (B2, C), out2.shape
    assert jnp.allclose(out2, ref2, atol=1e-2, rtol=1e-2), (out2, ref2)

    print("KERNEL_OK")
</pallas_src>

<mosaic_0001>
module attributes {stable_mosaic.version = 11 : i64} {
  func.func @_gcn_head_kernel(%arg0: i32, %arg1: memref<1x8x8x768xf32, #tpu.memory_space<vmem>>, %arg2: memref<768x128xf32, #tpu.memory_space<vmem>>, %arg3: memref<1x128xf32, #tpu.memory_space<vmem>>, %arg4: memref<128x32xf32, #tpu.memory_space<vmem>>, %arg5: memref<1x32xf32, #tpu.memory_space<vmem>>, %arg6: memref<32x128xf32, #tpu.memory_space<vmem>>, %arg7: memref<1x128xf32, #tpu.memory_space<vmem>>, %arg8: memref<1x8x128xf32, #tpu.memory_space<vmem>>) attributes {dimension_semantics = [#tpu.dimension_semantics<parallel>], iteration_bounds = array<i64: 1>, scalar_prefetch = 0 : i64, scratch_operands = 0 : i64, tpu.core_type = #tpu.core_type<tc>, window_params = [{transform_indices = @transform_0, window_bounds = array<i64: 1, 8, 8, 768>}, {pipeline_mode = #tpu.pipeline_mode<synchronous>, transform_indices = @transform_1, window_bounds = array<i64: 768, 128>}, {pipeline_mode = #tpu.pipeline_mode<synchronous>, transform_indices = @transform_2, window_bounds = array<i64: 1, 128>}, {pipeline_mode = #tpu.pipeline_mode<synchronous>, transform_indices = @transform_3, window_bounds = array<i64: 128, 32>}, {pipeline_mode = #tpu.pipeline_mode<synchronous>, transform_indices = @transform_4, window_bounds = array<i64: 1, 32>}, {pipeline_mode = #tpu.pipeline_mode<synchronous>, transform_indices = @transform_5, window_bounds = array<i64: 32, 128>}, {pipeline_mode = #tpu.pipeline_mode<synchronous>, transform_indices = @transform_6, window_bounds = array<i64: 1, 128>}, {transform_indices = @transform_7, window_bounds = array<i64: 1, 8, 128>}]} {
    %c0 = arith.constant 0 : index
    %c0_0 = arith.constant 0 : index
    %c0_1 = arith.constant 0 : index
    %c0_2 = arith.constant 0 : index
    %0 = vector.load %arg1[%c0, %c0_0, %c0_1, %c0_2] : memref<1x8x8x768xf32, #tpu.memory_space<vmem>>, vector<1x8x8x768xf32>
    %1 = vector.shape_cast %0 : vector<1x8x8x768xf32> to vector<8x8x768xf32>
    %cst = arith.constant dense<0.000000e+00> : vector<8x768xf32>
    %2 = vector.multi_reduction <add>, %1, %cst [1] : vector<8x8x768xf32> to vector<8x768xf32>
    %cst_3 = arith.constant 1.250000e-01 : f32
    %3 = vector.broadcast %cst_3 : f32 to vector<8x768xf32>
    %4 = arith.mulf %2, %3 : vector<8x768xf32>
    %c0_4 = arith.constant 0 : index
    %c0_5 = arith.constant 0 : index
    %5 = vector.load %arg2[%c0_4, %c0_5] : memref<768x128xf32, #tpu.memory_space<vmem>>, vector<768x128xf32>
    %cst_6 = arith.constant dense<0.000000e+00> : vector<8x128xf32>
    %6 = tpu.matmul %4, %5, %cst_6 {dimension_numbers = #tpu.dot_dimension_numbers<[1], [0], [0], [1], [0, 0, 1, 1], [], []>} : vector<8x768xf32>, vector<768x128xf32>, vector<8x128xf32> -> vector<8x128xf32>
    %c0_7 = arith.constant 0 : index
    %c0_8 = arith.constant 0 : index
    %7 = vector.load %arg3[%c0_7, %c0_8] : memref<1x128xf32, #tpu.memory_space<vmem>>, vector<1x128xf32>
    %8 = vector.broadcast %7 : vector<1x128xf32> to vector<8x128xf32>
    %9 = arith.addf %6, %8 : vector<8x128xf32>
    %c0_9 = arith.constant 0 : index
    %c0_10 = arith.constant 0 : index
    %10 = vector.load %arg4[%c0_9, %c0_10] : memref<128x32xf32, #tpu.memory_space<vmem>>, vector<128x32xf32>
    %cst_11 = arith.constant dense<0.000000e+00> : vector<8x32xf32>
    %11 = tpu.matmul %9, %10, %cst_11 {dimension_numbers = #tpu.dot_dimension_numbers<[1], [0], [0], [1], [0, 0, 1, 1], [], []>} : vector<8x128xf32>, vector<128x32xf32>, vector<8x32xf32> -> vector<8x32xf32>
    %c0_12 = arith.constant 0 : index
    %c0_13 = arith.constant 0 : index
    %12 = vector.load %arg5[%c0_12, %c0_13] : memref<1x32xf32, #tpu.memory_space<vmem>>, vector<1x32xf32>
    %13 = vector.broadcast %12 : vector<1x32xf32> to vector<8x32xf32>
    %14 = arith.addf %11, %13 : vector<8x32xf32>
    %cst_14 = arith.constant 0.000000e+00 : f32
    %15 = vector.broadcast %cst_14 : f32 to vector<8x32xf32>
    %16 = arith.maximumf %14, %15 : vector<8x32xf32>
    %c0_15 = arith.constant 0 : index
    %c0_16 = arith.constant 0 : index
    %17 = vector.load %arg6[%c0_15, %c0_16] : memref<32x128xf32, #tpu.memory_space<vmem>>, vector<32x128xf32>
    %cst_17 = arith.constant dense<0.000000e+00> : vector<8x128xf32>
    %18 = tpu.matmul %16, %17, %cst_17 {dimension_numbers = #tpu.dot_dimension_numbers<[1], [0], [0], [1], [0, 0, 1, 1], [], []>} : vector<8x32xf32>, vector<32x128xf32>, vector<8x128xf32> -> vector<8x128xf32>
    %c0_18 = arith.constant 0 : index
    %c0_19 = arith.constant 0 : index
    %19 = vector.load %arg7[%c0_18, %c0_19] : memref<1x128xf32, #tpu.memory_space<vmem>>, vector<1x128xf32>
    %20 = vector.broadcast %19 : vector<1x128xf32> to vector<8x128xf32>
    %21 = arith.addf %18, %20 : vector<8x128xf32>
    %cst_20 = arith.constant 8.000000e+00 : f32
    %22 = vector.broadcast %cst_20 : f32 to vector<8x128xf32>
    %23 = arith.mulf %22, %21 : vector<8x128xf32>
    %c0_21 = arith.constant 0 : index
    %c0_22 = arith.constant 0 : index
    %c0_23 = arith.constant 0 : index
    %24 = vector.load %arg8[%c0_21, %c0_22, %c0_23] : memref<1x8x128xf32, #tpu.memory_space<vmem>>, vector<1x8x128xf32>
    %25 = vector.shape_cast %24 : vector<1x8x128xf32> to vector<8x128xf32>
    %26 = vector.shape_cast %23 : vector<8x128xf32> to vector<1x8x128xf32>
    tpu.vector_store %arg8[%c0_21, %c0_22, %c0_23], %26 {strides = array<i32>} : memref<1x8x128xf32, #tpu.memory_space<vmem>>, vector<1x8x128xf32>,
    return
  }
  func.func @transform_0(%arg0: i32) -> (i32, i32, i32, i32) {
    %c0_i32 = arith.constant 0 : i32
    %c0_i32_0 = arith.constant 0 : i32
    %c0_i32_1 = arith.constant 0 : i32
    %c0_i32_2 = arith.constant 0 : i32
    return %arg0, %c0_i32, %c0_i32_0, %c0_i32_1 : i32, i32, i32, i32
  }
  func.func @transform_1(%arg0: i32) -> (i32, i32) {
    %c0_i32 = arith.constant 0 : i32
    %c0_i32_0 = arith.constant 0 : i32
    %c0_i32_1 = arith.constant 0 : i32
    return %c0_i32, %c0_i32_0 : i32, i32
  }
  func.func @transform_2(%arg0: i32) -> (i32, i32) {
    %c0_i32 = arith.constant 0 : i32
    %c0_i32_0 = arith.constant 0 : i32
    %c0_i32_1 = arith.constant 0 : i32
    return %c0_i32, %c0_i32_0 : i32, i32
  }
  func.func @transform_3(%arg0: i32) -> (i32, i32) {
    %c0_i32 = arith.constant 0 : i32
    %c0_i32_0 = arith.constant 0 : i32
    %c0_i32_1 = arith.constant 0 : i32
    return %c0_i32, %c0_i32_0 : i32, i32
  }
  func.func @transform_4(%arg0: i32) -> (i32, i32) {
    %c0_i32 = arith.constant 0 : i32
    %c0_i32_0 = arith.constant 0 : i32
    %c0_i32_1 = arith.constant 0 : i32
    return %c0_i32, %c0_i32_0 : i32, i32
  }
  func.func @transform_5(%arg0: i32) -> (i32, i32) {
    %c0_i32 = arith.constant 0 : i32
    %c0_i32_0 = arith.constant 0 : i32
    %c0_i32_1 = arith.constant 0 : i32
    return %c0_i32, %c0_i32_0 : i32, i32
  }
  func.func @transform_6(%arg0: i32) -> (i32, i32) {
    %c0_i32 = arith.constant 0 : i32
    %c0_i32_0 = arith.constant 0 : i32
    %c0_i32_1 = arith.constant 0 : i32
    return %c0_i32, %c0_i32_0 : i32, i32
  }
  func.func @transform_7(%arg0: i32) -> (i32, i32, i32) {
    %c0_i32 = arith.constant 0 : i32
    %c0_i32_0 = arith.constant 0 : i32
    %c0_i32_1 = arith.constant 0 : i32
    return %arg0, %c0_i32, %c0_i32_0 : i32, i32, i32
  }
}

</mosaic_0001>

<llo_original>
// kernel: tpu_custom_call.1
$region0: #{tpu_custom_call.1}
  #allocation0 [shape = 'u32[]', space=smem, size = 0x4, offset = 0x4, fixed_abs, tag = 'smem constant byte address 0x4 - core index']
  #allocation1 [shape = 'u32[72,128]{1,0:T(1,128)}', space=vmem, size = 0x9000, scoped, tag = 'internal scratch']
  %s0 = inlined_call_operand.hbm [shape: f32[1,8,8,768], index: 0, kind: input, shape index: {}]
  %s1 = inlined_call_operand.hbm [shape: f32[768,128], index: 1, kind: input, shape index: {}]
  %s2 = inlined_call_operand.vmem [shape: f32[1,128], index: 2, kind: input, shape index: {}]
  %s3 = inlined_call_operand.vmem [shape: f32[128,32], index: 3, kind: input, shape index: {}]
  %s4 = inlined_call_operand.vmem [shape: f32[1,32], index: 4, kind: input, shape index: {}]
  %s5 = inlined_call_operand.vmem [shape: f32[32,128], index: 5, kind: input, shape index: {}]
  %s6 = inlined_call_operand.vmem [shape: f32[1,128], index: 6, kind: input, shape index: {}]
  %s7 = inlined_call_operand.hbm [shape: f32[1,8,128], index: 7, kind: output, shape index: {}]
  %s8 = sld [smem:[#allocation0]]
  $region46: #{tpu_custom_call.1} parent=0
    _
  %s10 = ssub.s32 1, %s8
  %s11 = scalar_select 0, %s10, %s8
  $region1: #{tpu_custom_call.1} parent=0
    #allocation2 [shape = 'u8[196608]{0}', space=vmem, size = 0x30000, scoped, tag = 'input window, operand 0, single buffered']
    #allocation3 [shape = 's32[1]{0}', space=sflag, size = 0x4, scoped, tag = 'scoped memory for tpu_custom_call.1']
    #allocation4 [shape = 's32[1]{0}', space=sflag, size = 0x4, scoped, tag = 'scoped memory for tpu_custom_call.1']
    #allocation5 [shape = 'u8[393216]{0}', space=vmem, size = 0x60000, scoped, tag = 'input window, operand 1, single buffered']
    #allocation6 [shape = 's32[1]{0}', space=sflag, size = 0x4, scoped, tag = 'scoped memory for tpu_custom_call.1']
    #allocation7 [shape = 'u8[4096]{0}', space=vmem, size = 0x1000, scoped, tag = 'output window, operand 0, single buffered']
    %12 = vsyncpa [#allocation3], 0
    %13 = vsyncpa [#allocation6], 0
    %14 = vsyncpa [#allocation4], 0
    // Predicated region
    $region2: #{tpu_custom_call.1} parent=1 // pred_check
      _
    $region3: #{tpu_custom_call.1} parent=1 // pred_check_branch
      %16 = sbr.rel (0) target = $region5
    $region4: #{tpu_custom_call.1} parent=1 // pred_region
      %18 = vsyncadd [#allocation3], 0
      %s19 = sshll.u32 %s0, 4
      %s20 = int_to_ptr.hbm [resolvable:$true] %s19
      %s21 = sshll.u32 [#allocation2], 4
      %s22 = int_to_ptr.vmem [resolvable:$true] %s21
      %27 = dma.hbm_to_vmem [thread:$0]  %s20, 6144, %s22, [#allocation3], 768, 768, 48
    $region5: #{tpu_custom_call.1} parent=1 // pred_fallthru
      _
    // Predicated region
    $region6: #{tpu_custom_call.1} parent=1 // pred_check
      _
    $region7: #{tpu_custom_call.1} parent=1 // pred_check_branch
      %29 = sbr.rel (0) target = $region9
    $region8: #{tpu_custom_call.1} parent=1 // pred_region
      %31 = vsyncadd [#allocation6], 0
      %s32 = sshll.u32 %s1, 4
      %s33 = int_to_ptr.hbm [resolvable:$true] %s32
      %s34 = sshll.u32 [#allocation5], 4
      %s35 = int_to_ptr.vmem [resolvable:$true] %s34
      %40 = dma.hbm_to_vmem [thread:$0]  %s33, 12288, %s35, [#allocation6], 128, 128, 8
    $region9: #{tpu_custom_call.1} parent=1 // pred_fallthru
      _
    // Predicated region
    $region10: #{tpu_custom_call.1} parent=1 // pred_check
      _
    $region11: #{tpu_custom_call.1} parent=1 // pred_check_branch
      %42 = sbr.rel (0) target = $region13
    $region12: #{tpu_custom_call.1} parent=1 // pred_region
      _
    $region13: #{tpu_custom_call.1} parent=1 // pred_fallthru
      _
    // Predicated region
    $region14: #{tpu_custom_call.1} parent=1 // pred_check
      _
    $region15: #{tpu_custom_call.1} parent=1 // pred_check_branch
      %44 = sbr.rel (0) target = $region17
    $region16: #{tpu_custom_call.1} parent=1 // pred_region
      _
    $region17: #{tpu_custom_call.1} parent=1 // pred_fallthru
      _
    // Predicated region
    $region18: #{tpu_custom_call.1} parent=1 // pred_check
      _
    $region19: #{tpu_custom_call.1} parent=1 // pred_check_branch
      %46 = sbr.rel (0) target = $region21
    $region20: #{tpu_custom_call.1} parent=1 // pred_region
      _
    $region21: #{tpu_custom_call.1} parent=1 // pred_fallthru
      _
    // Predicated region
    $region22: #{tpu_custom_call.1} parent=1 // pred_check
      _
    $region23: #{tpu_custom_call.1} parent=1 // pred_check_branch
      %48 = sbr.rel (0) target = $region25
    $region24: #{tpu_custom_call.1} parent=1 // pred_region
      _
    $region25: #{tpu_custom_call.1} parent=1 // pred_fallthru
      _
    // Predicated region
    $region26: #{tpu_custom_call.1} parent=1 // pred_check
      _
    $region27: #{tpu_custom_call.1} parent=1 // pred_check_branch
      %50 = sbr.rel (0) target = $region29
    $region28: #{tpu_custom_call.1} parent=1 // pred_region
      _
    $region29: #{tpu_custom_call.1} parent=1 // pred_fallthru
      _
    // Predicated region
    $region30: #{tpu_custom_call.1} parent=1 // pred_check
      _
    $region31: #{tpu_custom_call.1} parent=1 // pred_check_branch
      %52 = sbr.rel (0) target = $region33
    $region32: #{tpu_custom_call.1} parent=1 // pred_region
      %54 = dma.done [#allocation3], 6144
    $region33: #{tpu_custom_call.1} parent=1 // pred_fallthru
      _
    // Predicated region
    $region34: #{tpu_custom_call.1} parent=1 // pred_check
      _
    $region35: #{tpu_custom_call.1} parent=1 // pred_check_branch
      %56 = sbr.rel (0) target = $region37
    $region36: #{tpu_custom_call.1} parent=1 // pred_region
      %58 = dma.done [#allocation6], 12288
    $region37: #{tpu_custom_call.1} parent=1 // pred_fallthru
      _
    %v59 = vld [vmem:[#allocation2] sm:$0xff]
    %v60 = vld [vmem:[#allocation2 + $0x8] sm:$0xff]
    %v61 = vld [vmem:[#allocation2 + $0x10] sm:$0xff]
    %v62 = vld [vmem:[#allocation2 + $0x18] sm:$0xff]
    %v63 = vld [vmem:[#allocation2 + $0x20] sm:$0xff]
    %v64 = vld [vmem:[#allocation2 + $0x28] sm:$0xff]
    %v65 = vld [vmem:[#allocation2 + $0x30] sm:$0xff]
    %v66 = vld [vmem:[#allocation2 + $0x38] sm:$0xff]
    %v67 = vld [vmem:[#allocation2 + $0x40] sm:$0xff]
    %v68 = vld [vmem:[#allocation2 + $0x48] sm:$0xff]
    %v69 = vld [vmem:[#allocation2 + $0x50] sm:$0xff]
    %v70 = vld [vmem:[#allocation2 + $0x58] sm:$0xff]
    %v71 = vld [vmem:[#allocation2 + $0x60] sm:$0xff]
    %v72 = vld [vmem:[#allocation2 + $0x68] sm:$0xff]
    %v73 = vld [vmem:[#allocation2 + $0x70] sm:$0xff]
    %v74 = vld [vmem:[#allocation2 + $0x78] sm:$0xff]
    %v75 = vld [vmem:[#allocation2 + $0x80] sm:$0xff]
    %v76 = vld [vmem:[#allocation2 + $0x88] sm:$0xff]
    %v77 = vld [vmem:[#allocation2 + $0x90] sm:$0xff]
    %v78 = vld [vmem:[#allocation2 + $0x98] sm:$0xff]
    %v79 = vld [vmem:[#allocation2 + $0xa0] sm:$0xff]
    %v80 = vld [vmem:[#allocation2 + $0xa8] sm:$0xff]
    %v81 = vld [vmem:[#allocation2 + $0xb0] sm:$0xff]
    %v82 = vld [vmem:[#allocation2 + $0xb8] sm:$0xff]
    %v83 = vld [vmem:[#allocation2 + $0xc0] sm:$0xff]
    %v84 = vld [vmem:[#allocation2 + $0xc8] sm:$0xff]
    %v85 = vld [vmem:[#allocation2 + $0xd0] sm:$0xff]
    %v86 = vld [vmem:[#allocation2 + $0xd8] sm:$0xff]
    %v87 = vld [vmem:[#allocation2 + $0xe0] sm:$0xff]
    %v88 = vld [vmem:[#allocation2 + $0xe8] sm:$0xff]
    %v89 = vld [vmem:[#allocation2 + $0xf0] sm:$0xff]
    %v90 = vld [vmem:[#allocation2 + $0xf8] sm:$0xff]
    %v91 = vld [vmem:[#allocation2 + $0x100] sm:$0xff]
    %v92 = vld [vmem:[#allocation2 + $0x108] sm:$0xff]
    %v93 = vld [vmem:[#allocation2 + $0x110] sm:$0xff]
    %v94 = vld [vmem:[#allocation2 + $0x118] sm:$0xff]
    %v95 = vld [vmem:[#allocation2 + $0x120] sm:$0xff]
    %v96 = vld [vmem:[#allocation2 + $0x128] sm:$0xff]
    %v97 = vld [vmem:[#allocation2 + $0x130] sm:$0xff]
    %v98 = vld [vmem:[#allocation2 + $0x138] sm:$0xff]
    %v99 = vld [vmem:[#allocation2 + $0x140] sm:$0xff]
    %v100 = vld [vmem:[#allocation2 + $0x148] sm:$0xff]
    %v101 = vld [vmem:[#allocation2 + $0x150] sm:$0xff]
    %v102 = vld [vmem:[#allocation2 + $0x158] sm:$0xff]
    %v103 = vld [vmem:[#allocation2 + $0x160] sm:$0xff]
    %v104 = vld [vmem:[#allocation2 + $0x168] sm:$0xff]
    %v105 = vld [vmem:[#allocation2 + $0x170] sm:$0xff]
    %v106 = vld [vmem:[#allocation2 + $0x178] sm:$0xff]
    %v107 = vrot.slane %v59, 4
    %v108 = vadd.f32 %v59, %v107
    %v109 = vrot.slane %v108, 2
    %v110 = vadd.f32 %v108, %v109
    %v111 = vrot.slane %v110, 1
    %v112 = vadd.f32 %v110, %v111
    %v113 = vrot.slane %v60, 4
    %v114 = vadd.f32 %v60, %v113
    %v115 = vrot.slane %v114, 2
    %v116 = vadd.f32 %v114, %v115
    %v117 = vrot.slane %v116, 1
    %v118 = vadd.f32 %v116, %v117
    %v119 = vrot.slane %v61, 4
    %v120 = vadd.f32 %v61, %v119
    %v121 = vrot.slane %v120, 2
    %v122 = vadd.f32 %v120, %v121
    %v123 = vrot.slane %v122, 1
    %v124 = vadd.f32 %v122, %v123
    %v125 = vrot.slane %v62, 4
    %v126 = vadd.f32 %v62, %v125
    %v127 = vrot.slane %v126, 2
    %v128 = vadd.f32 %v126, %v127
    %v129 = vrot.slane %v128, 1
    %v130 = vadd.f32 %v128, %v129
    %v131 = vrot.slane %v63, 4
    %v132 = vadd.f32 %v63, %v131
    %v133 = vrot.slane %v132, 2
    %v134 = vadd.f32 %v132, %v133
    %v135 = vrot.slane %v134, 1
    %v136 = vadd.f32 %v134, %v135
    %v137 = vrot.slane %v64, 4
    %v138 = vadd.f32 %v64, %v137
    %v139 = vrot.slane %v138, 2
    %v140 = vadd.f32 %v138, %v139
    %v141 = vrot.slane %v140, 1
    %v142 = vadd.f32 %v140, %v141
    %v143 = vrot.slane %v65, 4
    %v144 = vadd.f32 %v65, %v143
    %v145 = vrot.slane %v144, 2
    %v146 = vadd.f32 %v144, %v145
    %v147 = vrot.slane %v146, 1
    %v148 = vadd.f32 %v146, %v147
    %v149 = vrot.slane %v66, 4
    %v150 = vadd.f32 %v66, %v149
    %v151 = vrot.slane %v150, 2
    %v152 = vadd.f32 %v150, %v151
    %v153 = vrot.slane %v152, 1
    %v154 = vadd.f32 %v152, %v153
    %v155 = vrot.slane %v67, 4
    %v156 = vadd.f32 %v67, %v155
    %v157 = vrot.slane %v156, 2
    %v158 = vadd.f32 %v156, %v157
    %v159 = vrot.slane %v158, 1
    %v160 = vadd.f32 %v158, %v159
    %v161 = vrot.slane %v68, 4
    %v162 = vadd.f32 %v68, %v161
    %v163 = vrot.slane %v162, 2
    %v164 = vadd.f32 %v162, %v163
    %v165 = vrot.slane %v164, 1
    %v166 = vadd.f32 %v164, %v165
    %v167 = vrot.slane %v69, 4
    %v168 = vadd.f32 %v69, %v167
    %v169 = vrot.slane %v168, 2
    %v170 = vadd.f32 %v168, %v169
    %v171 = vrot.slane %v170, 1
    %v172 = vadd.f32 %v170, %v171
    %v173 = vrot.slane %v70, 4
    %v174 = vadd.f32 %v70, %v173
    %v175 = vrot.slane %v174, 2
    %v176 = vadd.f32 %v174, %v175
    %v177 = vrot.slane %v176, 1
    %v178 = vadd.f32 %v176, %v177
    %v179 = vrot.slane %v71, 4
    %v180 = vadd.f32 %v71, %v179
    %v181 = vrot.slane %v180, 2
    %v182 = vadd.f32 %v180, %v181
    %v183 = vrot.slane %v182, 1
    %v184 = vadd.f32 %v182, %v183
    %v185 = vrot.slane %v72, 4
    %v186 = vadd.f32 %v72, %v185
    %v187 = vrot.slane %v186, 2
    %v188 = vadd.f32 %v186, %v187
    %v189 = vrot.slane %v188, 1
    %v190 = vadd.f32 %v188, %v189
    %v191 = vrot.slane %v73, 4
    %v192 = vadd.f32 %v73, %v191
    %v193 = vrot.slane %v192, 2
    %v194 = vadd.f32 %v192, %v193
    %v195 = vrot.slane %v194, 1
    %v196 = vadd.f32 %v194, %v195
    %v197 = vrot.slane %v74, 4
    %v198 = vadd.f32 %v74, %v197
    %v199 = vrot.slane %v198, 2
    %v200 = vadd.f32 %v198, %v199
    %v201 = vrot.slane %v200, 1
    %v202 = vadd.f32 %v200, %v201
    %v203 = vrot.slane %v75, 4
    %v204 = vadd.f32 %v75, %v203
    %v205 = vrot.slane %v204, 2
    %v206 = vadd.f32 %v204, %v205
    %v207 = vrot.slane %v206, 1
    %v208 = vadd.f32 %v206, %v207
    %v209 = vrot.slane %v76, 4
    %v210 = vadd.f32 %v76, %v209
    %v211 = vrot.slane %v210, 2
    %v212 = vadd.f32 %v210, %v211
    %v213 = vrot.slane %v212, 1
    %v214 = vadd.f32 %v212, %v213
    %v215 = vrot.slane %v77, 4
    %v216 = vadd.f32 %v77, %v215
    %v217 = vrot.slane %v216, 2
    %v218 = vadd.f32 %v216, %v217
    %v219 = vrot.slane %v218, 1
    %v220 = vadd.f32 %v218, %v219
    %v221 = vrot.slane %v78, 4
    %v222 = vadd.f32 %v78, %v221
    %v223 = vrot.slane %v222, 2
    %v224 = vadd.f32 %v222, %v223
    %v225 = vrot.slane %v224, 1
    %v226 = vadd.f32 %v224, %v225
    %v227 = vrot.slane %v79, 4
    %v228 = vadd.f32 %v79, %v227
    %v229 = vrot.slane %v228, 2
    %v230 = vadd.f32 %v228, %v229
    %v231 = vrot.slane %v230, 1
    %v232 = vadd.f32 %v230, %v231
    %v233 = vrot.slane %v80, 4
    %v234 = vadd.f32 %v80, %v233
    %v235 = vrot.slane %v234, 2
    %v236 = vadd.f32 %v234, %v235
    %v237 = vrot.slane %v236, 1
    %v238 = vadd.f32 %v236, %v237
    %v239 = vrot.slane %v81, 4
    %v240 = vadd.f32 %v81, %v239
    %v241 = vrot.slane %v240, 2
    %v242 = vadd.f32 %v240, %v241
    %v243 = vrot.slane %v242, 1
    %v244 = vadd.f32 %v242, %v243
    %v245 = vrot.slane %v82, 4
    %v246 = vadd.f32 %v82, %v245
    %v247 = vrot.slane %v246, 2
    %v248 = vadd.f32 %v246, %v247
    %v249 = vrot.slane %v248, 1
    %v250 = vadd.f32 %v248, %v249
    %v251 = vrot.slane %v83, 4
    %v252 = vadd.f32 %v83, %v251
    %v253 = vrot.slane %v252, 2
    %v254 = vadd.f32 %v252, %v253
    %v255 = vrot.slane %v254, 1
    %v256 = vadd.f32 %v254, %v255
    %v257 = vrot.slane %v84, 4
    %v258 = vadd.f32 %v84, %v257
    %v259 = vrot.slane %v258, 2
    %v260 = vadd.f32 %v258, %v259
    %v261 = vrot.slane %v260, 1
    %v262 = vadd.f32 %v260, %v261
    %v263 = vrot.slane %v85, 4
    %v264 = vadd.f32 %v85, %v263
    %v265 = vrot.slane %v264, 2
    %v266 = vadd.f32 %v264, %v265
    %v267 = vrot.slane %v266, 1
    %v268 = vadd.f32 %v266, %v267
    %v269 = vrot.slane %v86, 4
    %v270 = vadd.f32 %v86, %v269
    %v271 = vrot.slane %v270, 2
    %v272 = vadd.f32 %v270, %v271
    %v273 = vrot.slane %v272, 1
    %v274 = vadd.f32 %v272, %v273
    %v275 = vrot.slane %v87, 4
    %v276 = vadd.f32 %v87, %v275
    %v277 = vrot.slane %v276, 2
    %v278 = vadd.f32 %v276, %v277
    %v279 = vrot.slane %v278, 1
    %v280 = vadd.f32 %v278, %v279
    %v281 = vrot.slane %v88, 4
    %v282 = vadd.f32 %v88, %v281
    %v283 = vrot.slane %v282, 2
    %v284 = vadd.f32 %v282, %v283
    %v285 = vrot.slane %v284, 1
    %v286 = vadd.f32 %v284, %v285
    %v287 = vrot.slane %v89, 4
    %v288 = vadd.f32 %v89, %v287
    %v289 = vrot.slane %v288, 2
    %v290 = vadd.f32 %v288, %v289
    %v291 = vrot.slane %v290, 1
    %v292 = vadd.f32 %v290, %v291
    %v293 = vrot.slane %v90, 4
    %v294 = vadd.f32 %v90, %v293
    %v295 = vrot.slane %v294, 2
    %v296 = vadd.f32 %v294, %v295
    %v297 = vrot.slane %v296, 1
    %v298 = vadd.f32 %v296, %v297
    %v299 = vrot.slane %v91, 4
    %v300 = vadd.f32 %v91, %v299
    %v301 = vrot.slane %v300, 2
    %v302 = vadd.f32 %v300, %v301
    %v303 = vrot.slane %v302, 1
    %v304 = vadd.f32 %v302, %v303
    %v305 = vrot.slane %v92, 4
    %v306 = vadd.f32 %v92, %v305
    %v307 = vrot.slane %v306, 2
    %v308 = vadd.f32 %v306, %v307
    %v309 = vrot.slane %v308, 1
    %v310 = vadd.f32 %v308, %v309
    %v311 = vrot.slane %v93, 4
    %v312 = vadd.f32 %v93, %v311
    %v313 = vrot.slane %v312, 2
    %v314 = vadd.f32 %v312, %v313
    %v315 = vrot.slane %v314, 1
    %v316 = vadd.f32 %v314, %v315
    %v317 = vrot.slane %v94, 4
    %v318 = vadd.f32 %v94, %v317
    %v319 = vrot.slane %v318, 2
    %v320 = vadd.f32 %v318, %v319
    %v321 = vrot.slane %v320, 1
    %v322 = vadd.f32 %v320, %v321
    %v323 = vrot.slane %v95, 4
    %v324 = vadd.f32 %v95, %v323
    %v325 = vrot.slane %v324, 2
    %v326 = vadd.f32 %v324, %v325
    %v327 = vrot.slane %v326, 1
    %v328 = vadd.f32 %v326, %v327
    %v329 = vrot.slane %v96, 4
    %v330 = vadd.f32 %v96, %v329
    %v331 = vrot.slane %v330, 2
    %v332 = vadd.f32 %v330, %v331
    %v333 = vrot.slane %v332, 1
    %v334 = vadd.f32 %v332, %v333
    %v335 = vrot.slane %v97, 4
    %v336 = vadd.f32 %v97, %v335
    %v337 = vrot.slane %v336, 2
    %v338 = vadd.f32 %v336, %v337
    %v339 = vrot.slane %v338, 1
    %v340 = vadd.f32 %v338, %v339
    %v341 = vrot.slane %v98, 4
    %v342 = vadd.f32 %v98, %v341
    %v343 = vrot.slane %v342, 2
    %v344 = vadd.f32 %v342, %v343
    %v345 = vrot.slane %v344, 1
    %v346 = vadd.f32 %v344, %v345
    %v347 = vrot.slane %v99, 4
    %v348 = vadd.f32 %v99, %v347
    %v349 = vrot.slane %v348, 2
    %v350 = vadd.f32 %v348, %v349
    %v351 = vrot.slane %v350, 1
    %v352 = vadd.f32 %v350, %v351
    %v353 = vrot.slane %v100, 4
    %v354 = vadd.f32 %v100, %v353
    %v355 = vrot.slane %v354, 2
    %v356 = vadd.f32 %v354, %v355
    %v357 = vrot.slane %v356, 1
    %v358 = vadd.f32 %v356, %v357
    %v359 = vrot.slane %v101, 4
    %v360 = vadd.f32 %v101, %v359
    %v361 = vrot.slane %v360, 2
    %v362 = vadd.f32 %v360, %v361
    %v363 = vrot.slane %v362, 1
    %v364 = vadd.f32 %v362, %v363
    %v365 = vrot.slane %v102, 4
    %v366 = vadd.f32 %v102, %v365
    %v367 = vrot.slane %v366, 2
    %v368 = vadd.f32 %v366, %v367
    %v369 = vrot.slane %v368, 1
    %v370 = vadd.f32 %v368, %v369
    %v371 = vrot.slane %v103, 4
    %v372 = vadd.f32 %v103, %v371
    %v373 = vrot.slane %v372, 2
    %v374 = vadd.f32 %v372, %v373
    %v375 = vrot.slane %v374, 1
    %v376 = vadd.f32 %v374, %v375
    %v377 = vrot.slane %v104, 4
    %v378 = vadd.f32 %v104, %v377
    %v379 = vrot.slane %v378, 2
    %v380 = vadd.f32 %v378, %v379
    %v381 = vrot.slane %v380, 1
    %v382 = vadd.f32 %v380, %v381
    %v383 = vrot.slane %v105, 4
    %v384 = vadd.f32 %v105, %v383
    %v385 = vrot.slane %v384, 2
    %v386 = vadd.f32 %v384, %v385
    %v387 = vrot.slane %v386, 1
    %v388 = vadd.f32 %v386, %v387
    %v389 = vrot.slane %v106, 4
    %v390 = vadd.f32 %v106, %v389
    %v391 = vrot.slane %v390, 2
    %v392 = vadd.f32 %v390, %v391
    %v393 = vrot.slane %v392, 1
    %v394 = vadd.f32 %v392, %v393
    %v395 = vmul.f32 %v112, 0.125
    %v396 = vmul.f32 %v118, 0.125
    %v397 = vmul.f32 %v124, 0.125
    %v398 = vmul.f32 %v130, 0.125
    %v399 = vmul.f32 %v136, 0.125
    %v400 = vmul.f32 %v142, 0.125
    %v401 = vmul.f32 %v148, 0.125
    %v402 = vmul.f32 %v154, 0.125
    %v403 = vmul.f32 %v160, 0.125
    %v404 = vmul.f32 %v166, 0.125
    %v405 = vmul.f32 %v172, 0.125
    %v406 = vmul.f32 %v178, 0.125
    %v407 = vmul.f32 %v184, 0.125
    %v408 = vmul.f32 %v190, 0.125
    %v409 = vmul.f32 %v196, 0.125
    %v410 = vmul.f32 %v202, 0.125
    %v411 = vmul.f32 %v208, 0.125
    %v412 = vmul.f32 %v214, 0.125
    %v413 = vmul.f32 %v220, 0.125
    %v414 = vmul.f32 %v226, 0.125
    %v415 = vmul.f32 %v232, 0.125
    %v416 = vmul.f32 %v238, 0.125
    %v417 = vmul.f32 %v244, 0.125
    %v418 = vmul.f32 %v250, 0.125
    %v419 = vmul.f32 %v256, 0.125
    %v420 = vmul.f32 %v262, 0.125
    %v421 = vmul.f32 %v268, 0.125
    %v422 = vmul.f32 %v274, 0.125
    %v423 = vmul.f32 %v280, 0.125
    %v424 = vmul.f32 %v286, 0.125
    %v425 = vmul.f32 %v292, 0.125
    %v426 = vmul.f32 %v298, 0.125
    %v427 = vmul.f32 %v304, 0.125
    %v428 = vmul.f32 %v310, 0.125
    %v429 = vmul.f32 %v316, 0.125
    %v430 = vmul.f32 %v322, 0.125
    %v431 = vmul.f32 %v328, 0.125
    %v432 = vmul.f32 %v334, 0.125
    %v433 = vmul.f32 %v340, 0.125
    %v434 = vmul.f32 %v346, 0.125
    %v435 = vmul.f32 %v352, 0.125
    %v436 = vmul.f32 %v358, 0.125
    %v437 = vmul.f32 %v364, 0.125
    %v438 = vmul.f32 %v370, 0.125
    %v439 = vmul.f32 %v376, 0.125
    %v440 = vmul.f32 %v382, 0.125
    %v441 = vmul.f32 %v388, 0.125
    %v442 = vmul.f32 %v394, 0.125
    %v443 = vld [vmem:[#allocation5] sm:$0xff]
    %v444 = vld [vmem:[#allocation5 + $0x8] sm:$0xff]
    %v445 = vld [vmem:[#allocation5 + $0x10] sm:$0xff]
    %v446 = vld [vmem:[#allocation5 + $0x18] sm:$0xff]
    %v447 = vld [vmem:[#allocation5 + $0x20] sm:$0xff]
    %v448 = vld [vmem:[#allocation5 + $0x28] sm:$0xff]
    %v449 = vld [vmem:[#allocation5 + $0x30] sm:$0xff]
    %v450 = vld [vmem:[#allocation5 + $0x38] sm:$0xff]
    %v451 = vld [vmem:[#allocation5 + $0x40] sm:$0xff]
    %v452 = vld [vmem:[#allocation5 + $0x48] sm:$0xff]
    %v453 = vld [vmem:[#allocation5 + $0x50] sm:$0xff]
    %v454 = vld [vmem:[#allocation5 + $0x58] sm:$0xff]
    %v455 = vld [vmem:[#allocation5 + $0x60] sm:$0xff]
    %v456 = vld [vmem:[#allocation5 + $0x68] sm:$0xff]
    %v457 = vld [vmem:[#allocation5 + $0x70] sm:$0xff]
    %v458 = vld [vmem:[#allocation5 + $0x78] sm:$0xff]
    %v459 = vld [vmem:[#allocation5 + $0x80] sm:$0xff]
    %v460 = vld [vmem:[#allocation5 + $0x88] sm:$0xff]
    %v461 = vld [vmem:[#allocation5 + $0x90] sm:$0xff]
    %v462 = vld [vmem:[#allocation5 + $0x98] sm:$0xff]
    %v463 = vld [vmem:[#allocation5 + $0xa0] sm:$0xff]
    %v464 = vld [vmem:[#allocation5 + $0xa8] sm:$0xff]
    %v465 = vld [vmem:[#allocation5 + $0xb0] sm:$0xff]
    %v466 = vld [vmem:[#allocation5 + $0xb8] sm:$0xff]
    %v467 = vld [vmem:[#allocation5 + $0xc0] sm:$0xff]
    %v468 = vld [vmem:[#allocation5 + $0xc8] sm:$0xff]
    %v469 = vld [vmem:[#allocation5 + $0xd0] sm:$0xff]
    %v470 = vld [vmem:[#allocation5 + $0xd8] sm:$0xff]
    %v471 = vld [vmem:[#allocation5 + $0xe0] sm:$0xff]
    %v472 = vld [vmem:[#allocation5 + $0xe8] sm:$0xff]
    %v473 = vld [vmem:[#allocation5 + $0xf0] sm:$0xff]
    %v474 = vld [vmem:[#allocation5 + $0xf8] sm:$0xff]
    %v475 = vld [vmem:[#allocation5 + $0x100] sm:$0xff]
    %v476 = vld [vmem:[#allocation5 + $0x108] sm:$0xff]
    %v477 = vld [vmem:[#allocation5 + $0x110] sm:$0xff]
    %v478 = vld [vmem:[#allocation5 + $0x118] sm:$0xff]
    %v479 = vld [vmem:[#allocation5 + $0x120] sm:$0xff]
    %v480 = vld [vmem:[#allocation5 + $0x128] sm:$0xff]
    %v481 = vld [vmem:[#allocation5 + $0x130] sm:$0xff]
    %v482 = vld [vmem:[#allocation5 + $0x138] sm:$0xff]
    %v483 = vld [vmem:[#allocation5 + $0x140] sm:$0xff]
    %v484 = vld [vmem:[#allocation5 + $0x148] sm:$0xff]
    %v485 = vld [vmem:[#allocation5 + $0x150] sm:$0xff]
    %v486 = vld [vmem:[#allocation5 + $0x158] sm:$0xff]
    %v487 = vld [vmem:[#allocation5 + $0x160] sm:$0xff]
    %v488 = vld [vmem:[#allocation5 + $0x168] sm:$0xff]
    %v489 = vld [vmem:[#allocation5 + $0x170] sm:$0xff]
    %v490 = vld [vmem:[#allocation5 + $0x178] sm:$0xff]
    %v491 = vld [vmem:[#allocation5 + $0x180] sm:$0xff]
    %v492 = vld [vmem:[#allocation5 + $0x188] sm:$0xff]
    %v493 = vld [vmem:[#allocation5 + $0x190] sm:$0xff]
    %v494 = vld [vmem:[#allocation5 + $0x198] sm:$0xff]
    %v495 = vld [vmem:[#allocation5 + $0x1a0] sm:$0xff]
    %v496 = vld [vmem:[#allocation5 + $0x1a8] sm:$0xff]
    %v497 = vld [vmem:[#allocation5 + $0x1b0] sm:$0xff]
    %v498 = vld [vmem:[#allocation5 + $0x1b8] sm:$0xff]
    %v499 = vld [vmem:[#allocation5 + $0x1c0] sm:$0xff]
    %v500 = vld [vmem:[#allocation5 + $0x1c8] sm:$0xff]
    %v501 = vld [vmem:[#allocation5 + $0x1d0] sm:$0xff]
    %v502 = vld [vmem:[#allocation5 + $0x1d8] sm:$0xff]
    %v503 = vld [vmem:[#allocation5 + $0x1e0] sm:$0xff]
    %v504 = vld [vmem:[#allocation5 + $0x1e8] sm:$0xff]
    %v505 = vld [vmem:[#allocation5 + $0x1f0] sm:$0xff]
    %v506 = vld [vmem:[#allocation5 + $0x1f8] sm:$0xff]
    %v507 = vld [vmem:[#allocation5 + $0x200] sm:$0xff]
    %v508 = vld [vmem:[#allocation5 + $0x208] sm:$0xff]
    %v509 = vld [vmem:[#allocation5 + $0x210] sm:$0xff]
    %v510 = vld [vmem:[#allocation5 + $0x218] sm:$0xff]
    %v511 = vld [vmem:[#allocation5 + $0x220] sm:$0xff]
    %v512 = vld [vmem:[#allocation5 + $0x228] sm:$0xff]
    %v513 = vld [vmem:[#allocation5 + $0x230] sm:$0xff]
    %v514 = vld [vmem:[#allocation5 + $0x238] sm:$0xff]
    %v515 = vld [vmem:[#allocation5 + $0x240] sm:$0xff]
    %v516 = vld [vmem:[#allocation5 + $0x248] sm:$0xff]
    %v517 = vld [vmem:[#allocation5 + $0x250] sm:$0xff]
    %v518 = vld [vmem:[#allocation5 + $0x258] sm:$0xff]
    %v519 = vld [vmem:[#allocation5 + $0x260] sm:$0xff]
    %v520 = vld [vmem:[#allocation5 + $0x268] sm:$0xff]
    %v521 = vld [vmem:[#allocation5 + $0x270] sm:$0xff]
    %v522 = vld [vmem:[#allocation5 + $0x278] sm:$0xff]
    %v523 = vld [vmem:[#allocation5 + $0x280] sm:$0xff]
    %v524 = vld [vmem:[#allocation5 + $0x288] sm:$0xff]
    %v525 = vld [vmem:[#allocation5 + $0x290] sm:$0xff]
    %v526 = vld [vmem:[#allocation5 + $0x298] sm:$0xff]
    %v527 = vld [vmem:[#allocation5 + $0x2a0] sm:$0xff]
    %v528 = vld [vmem:[#allocation5 + $0x2a8] sm:$0xff]
    %v529 = vld [vmem:[#allocation5 + $0x2b0] sm:$0xff]
    %v530 = vld [vmem:[#allocation5 + $0x2b8] sm:$0xff]
    %v531 = vld [vmem:[#allocation5 + $0x2c0] sm:$0xff]
    %v532 = vld [vmem:[#allocation5 + $0x2c8] sm:$0xff]
    %v533 = vld [vmem:[#allocation5 + $0x2d0] sm:$0xff]
    %v534 = vld [vmem:[#allocation5 + $0x2d8] sm:$0xff]
    %v535 = vld [vmem:[#allocation5 + $0x2e0] sm:$0xff]
    %v536 = vld [vmem:[#allocation5 + $0x2e8] sm:$0xff]
    %v537 = vld [vmem:[#allocation5 + $0x2f0] sm:$0xff]
    %v538 = vld [vmem:[#allocation5 + $0x2f8] sm:$0xff]
    %v539 = vld [vmem:[%s2] sm:$0x1]
    %v541 = vperm.slane %v539, 0
    %vm591 = vcmask 1041409
    %v592 = vsel %vm591, %v401, %v395
    %vm593 = vcmask 1042434
    %v594 = vsel %vm593, %v407, %v592
    %vm595 = vcmask 1043459
    %v596 = vsel %vm595, %v413, %v594
    %vm597 = vcmask 1044484
    %v598 = vsel %vm597, %v419, %v596
    %vm599 = vcmask 1045509
    %v600 = vsel %vm599, %v425, %v598
    %vm601 = vcmask 1046534
    %v602 = vsel %vm601, %v431, %v600
    %vm603 = vcmask 1047559
    %v604 = vsel %vm603, %v437, %v602
    %v605 = vsel %vm591, %v402, %v396
    %v606 = vsel %vm593, %v408, %v605
    %v607 = vsel %vm595, %v414, %v606
    %v608 = vsel %vm597, %v420, %v607
    %v609 = vsel %vm599, %v426, %v608
    %v610 = vsel %vm601, %v432, %v609
    %v611 = vsel %vm603, %v438, %v610
    %v612 = vsel %vm591, %v403, %v397
    %v613 = vsel %vm593, %v409, %v612
    %v614 = vsel %vm595, %v415, %v613
    %v615 = vsel %vm597, %v421, %v614
    %v616 = vsel %vm599, %v427, %v615
    %v617 = vsel %vm601, %v433, %v616
    %v618 = vsel %vm603, %v439, %v617
    %v619 = vsel %vm591, %v404, %v398
    %v620 = vsel %vm593, %v410, %v619
    %v621 = vsel %vm595, %v416, %v620
    %v622 = vsel %vm597, %v422, %v621
    %v623 = vsel %vm599, %v428, %v622
    %v624 = vsel %vm601, %v434, %v623
    %v625 = vsel %vm603, %v440, %v624
    %v626 = vsel %vm591, %v405, %v399
    %v627 = vsel %vm593, %v411, %v626
    %v628 = vsel %vm595, %v417, %v627
    %v629 = vsel %vm597, %v423, %v628
    %v630 = vsel %vm599, %v429, %v629
    %v631 = vsel %vm601, %v435, %v630
    %v632 = vsel %vm603, %v441, %v631
    %v633 = vsel %vm591, %v406, %v400
    %v634 = vsel %vm593, %v412, %v633
    %v635 = vsel %vm595, %v418, %v634
    %v636 = vsel %vm597, %v424, %v635
    %v637 = vsel %vm599, %v430, %v636
    %v638 = vsel %vm601, %v436, %v637
    %v639 = vsel %vm603, %v442, %v638
    %646 = vmatpush.msra.mxu0 %v458
    %647 = vmatpush.msra.mxu0 %v457
    %648 = vmatpush.msra.mxu0 %v456
    %649 = vmatpush.msra.mxu0 %v455
    %650 = vmatpush.msra.mxu0 %v454
    %651 = vmatpush.msra.mxu0 %v453
    %652 = vmatpush.msra.mxu0 %v452
    %653 = vmatpush.msra.mxu0 %v451
    %654 = vmatpush.msra.mxu0 %v450
    %655 = vmatpush.msra.mxu0 %v449
    %656 = vmatpush.msra.mxu0 %v448
    %657 = vmatpush.msra.mxu0 %v447
    %658 = vmatpush.msra.mxu0 %v446
    %659 = vmatpush.msra.mxu0 %v445
    %660 = vmatpush.msra.mxu0 %v444
    %661 = vmatpush.msra.mxu0 %v443
    %662 = vmatmul.f32.gmra.mxu0 %v604
    %v663 = vpop.f32.mrf.mxu0
    %v664 = vadd.f32 %v541, %v663
    %665 = vdwg.mxu0
    %666 = vmatpush.msra.mxu0 %v474
    %667 = vmatpush.msra.mxu0 %v473
    %668 = vmatpush.msra.mxu0 %v472
    %669 = vmatpush.msra.mxu0 %v471
    %670 = vmatpush.msra.mxu0 %v470
    %671 = vmatpush.msra.mxu0 %v469
    %672 = vmatpush.msra.mxu0 %v468
    %673 = vmatpush.msra.mxu0 %v467
    %674 = vmatpush.msra.mxu0 %v466
    %675 = vmatpush.msra.mxu0 %v465
    %676 = vmatpush.msra.mxu0 %v464
    %677 = vmatpush.msra.mxu0 %v463
    %678 = vmatpush.msra.mxu0 %v462
    %679 = vmatpush.msra.mxu0 %v461
    %680 = vmatpush.msra.mxu0 %v460
    %681 = vmatpush.msra.mxu0 %v459
    %682 = vmatmul.f32.gmra.mxu0 %v611
    %v683 = vpop.f32.mrf.mxu0
    %v684 = vadd.f32 %v664, %v683
    %685 = vdwg.mxu0
    %686 = vmatpush.msra.mxu0 %v490
    %687 = vmatpush.msra.mxu0 %v489
    %688 = vmatpush.msra.mxu0 %v488
    %689 = vmatpush.msra.mxu0 %v487
    %690 = vmatpush.msra.mxu0 %v486
    %691 = vmatpush.msra.mxu0 %v485
    %692 = vmatpush.msra.mxu0 %v484
    %693 = vmatpush.msra.mxu0 %v483
    %694 = vmatpush.msra.mxu0 %v482
    %695 = vmatpush.msra.mxu0 %v481
    %696 = vmatpush.msra.mxu0 %v480
    %697 = vmatpush.msra.mxu0 %v479
    %698 = vmatpush.msra.mxu0 %v478
    %699 = vmatpush.msra.mxu0 %v477
    %700 = vmatpush.msra.mxu0 %v476
    %701 = vmatpush.msra.mxu0 %v475
    %702 = vmatmul.f32.gmra.mxu0 %v618
    %v703 = vpop.f32.mrf.mxu0
    %v704 = vadd.f32 %v684, %v703
    %705 = vdwg.mxu0
    %706 = vmatpush.msra.mxu0 %v506
    %707 = vmatpush.msra.mxu0 %v505
    %708 = vmatpush.msra.mxu0 %v504
    %709 = vmatpush.msra.mxu0 %v503
    %710 = vmatpush.msra.mxu0 %v502
    %711 = vmatpush.msra.mxu0 %v501
    %712 = vmatpush.msra.mxu0 %v500
    %713 = vmatpush.msra.mxu0 %v499
    %714 = vmatpush.msra.mxu0 %v498
    %715 = vmatpush.msra.mxu0 %v497
    %716 = vmatpush.msra.mxu0 %v496
    %717 = vmatpush.msra.mxu0 %v495
    %718 = vmatpush.msra.mxu0 %v494
    %719 = vmatpush.msra.mxu0 %v493
    %720 = vmatpush.msra.mxu0 %v492
    %721 = vmatpush.msra.mxu0 %v491
    %722 = vmatmul.f32.gmra.mxu0 %v625
    %v723 = vpop.f32.mrf.mxu0
    %v724 = vadd.f32 %v704, %v723
    %725 = vdwg.mxu0
    %726 = vmatpush.msra.mxu0 %v522
    %727 = vmatpush.msra.mxu0 %v521
    %728 = vmatpush.msra.mxu0 %v520
    %729 = vmatpush.msra.mxu0 %v519
    %730 = vmatpush.msra.mxu0 %v518
    %731 = vmatpush.msra.mxu0 %v517
    %732 = vmatpush.msra.mxu0 %v516
    %733 = vmatpush.msra.mxu0 %v515
    %734 = vmatpush.msra.mxu0 %v514
    %735 = vmatpush.msra.mxu0 %v513
    %736 = vmatpush.msra.mxu0 %v512
    %737 = vmatpush.msra.mxu0 %v511
    %738 = vmatpush.msra.mxu0 %v510
    %739 = vmatpush.msra.mxu0 %v509
    %740 = vmatpush.msra.mxu0 %v508
    %741 = vmatpush.msra.mxu0 %v507
    %742 = vmatmul.f32.gmra.mxu0 %v632
    %v743 = vpop.f32.mrf.mxu0
    %v744 = vadd.f32 %v724, %v743
    %745 = vdwg.mxu0
    %746 = vmatpush.msra.mxu0 %v538
    %747 = vmatpush.msra.mxu0 %v537
    %748 = vmatpush.msra.mxu0 %v536
    %749 = vmatpush.msra.mxu0 %v535
    %750 = vmatpush.msra.mxu0 %v534
    %751 = vmatpush.msra.mxu0 %v533
    %752 = vmatpush.msra.mxu0 %v532
    %753 = vmatpush.msra.mxu0 %v531
    %754 = vmatpush.msra.mxu0 %v530
    %755 = vmatpush.msra.mxu0 %v529
    %756 = vmatpush.msra.mxu0 %v528
    %757 = vmatpush.msra.mxu0 %v527
    %758 = vmatpush.msra.mxu0 %v526
    %759 = vmatpush.msra.mxu0 %v525
    %760 = vmatpush.msra.mxu0 %v524
    %761 = vmatpush.msra.mxu0 %v523
    %762 = vmatmul.f32.gmra.mxu0 %v639
    %v763 = vpop.f32.mrf.mxu0
    %v764 = vadd.f32 %v744, %v763
    %765 = vdwg.mxu0
    %v766 = vld [vmem:[%s3] sm:$0xff]
    %v767 = vld [vmem:[%s3 + $0x8] sm:$0xff]
    %v768 = vld [vmem:[%s3 + $0x10] sm:$0xff]
    %v769 = vld [vmem:[%s3 + $0x18] sm:$0xff]
    %v770 = vld [vmem:[%s3 + $0x20] sm:$0xff]
    %v771 = vld [vmem:[%s3 + $0x28] sm:$0xff]
    %v772 = vld [vmem:[%s3 + $0x30] sm:$0xff]
    %v773 = vld [vmem:[%s3 + $0x38] sm:$0xff]
    %v774 = vld [vmem:[%s3 + $0x40] sm:$0xff]
    %v775 = vld [vmem:[%s3 + $0x48] sm:$0xff]
    %v776 = vld [vmem:[%s3 + $0x50] sm:$0xff]
    %v777 = vld [vmem:[%s3 + $0x58] sm:$0xff]
    %v778 = vld [vmem:[%s3 + $0x60] sm:$0xff]
    %v779 = vld [vmem:[%s3 + $0x68] sm:$0xff]
    %v780 = vld [vmem:[%s3 + $0x70] sm:$0xff]
    %v781 = vld [vmem:[%s3 + $0x78] sm:$0xff]
    %v782 = vld [vmem:[%s4] sm:$0x1]
    %v784 = vperm.slane %v782, 0
    %786 = vmatpush.msra.mxu0 %v781
    %787 = vmatpush.msra.mxu0 %v780
    %788 = vmatpush.msra.mxu0 %v779
    %789 = vmatpush.msra.mxu0 %v778
    %790 = vmatpush.msra.mxu0 %v777
    %791 = vmatpush.msra.mxu0 %v776
    %792 = vmatpush.msra.mxu0 %v775
    %793 = vmatpush.msra.mxu0 %v774
    %794 = vmatpush.msra.mxu0 %v773
    %795 = vmatpush.msra.mxu0 %v772
    %796 = vmatpush.msra.mxu0 %v771
    %797 = vmatpush.msra.mxu0 %v770
    %798 = vmatpush.msra.mxu0 %v769
    %799 = vmatpush.msra.mxu0 %v768
    %800 = vmatpush.msra.mxu0 %v767
    %801 = vmatpush.msra.mxu0 %v766
    %802 = vmatmul.f32.gmra.mxu0 %v764
    %v803 = vpop.f32.mrf.mxu0
    %v804 = vadd.f32 %v784, %v803
    %805 = vdwg.mxu0
    %v806 = vmax.f32 %v804, 0.0
    %v807 = vld [vmem:[%s5] sm:$0xff]
    %v808 = vld [vmem:[%s5 + $0x8] sm:$0xff]
    %v809 = vld [vmem:[%s5 + $0x10] sm:$0xff]
    %v810 = vld [vmem:[%s5 + $0x18] sm:$0xff]
    %v811 = vld [vmem:[%s6] sm:$0x1]
    %v813 = vperm.slane %v811, 0
    %vm815 = vcmask 261120
    %v817 = vsel %vm815, %v806, 0
    %819 = vmatpush.msra.mxu0 0.0
    %820 = vmatpush.msra.mxu0 0.0
    %821 = vmatpush.msra.mxu0 0.0
    %822 = vmatpush.msra.mxu0 0.0
    %823 = vmatpush.msra.mxu0 0.0
    %824 = vmatpush.msra.mxu0 0.0
    %825 = vmatpush.msra.mxu0 0.0
    %826 = vmatpush.msra.mxu0 0.0
    %827 = vmatpush.msra.mxu0 0.0
    %828 = vmatpush.msra.mxu0 0.0
    %829 = vmatpush.msra.mxu0 0.0
    %830 = vmatpush.msra.mxu0 0.0
    %831 = vmatpush.msra.mxu0 %v810
    %832 = vmatpush.msra.mxu0 %v809
    %833 = vmatpush.msra.mxu0 %v808
    %834 = vmatpush.msra.mxu0 %v807
    %835 = vmatmul.f32.gmra.mxu0 %v817
    %v836 = vpop.f32.mrf.mxu0
    %v837 = vadd.f32 %v813, %v836
    %838 = vdwg.mxu0
    %v839 = vmul.f32 %v837, 8.0
    %840 = vst [vmem:[#allocation7] sm:$0xff] %v839
    // Predicated region
    $region38: #{tpu_custom_call.1} parent=1 // pred_check
      _
    $region39: #{tpu_custom_call.1} parent=1 // pred_check_branch
      %842 = sbr.rel (0) target = $region41
    $region40: #{tpu_custom_call.1} parent=1 // pred_region
      %844 = vsyncadd [#allocation4], 0
      %s846 = sshll.u32 [#allocation7], 4
      %s847 = int_to_ptr.vmem [resolvable:$true] %s846
      %s848 = sshll.u32 %s7, 4
      %s849 = int_to_ptr.hbm [resolvable:$true] %s848
      %851 = dma.vmem_to_hbm [thread:$0]  %s847, 128, %s849, [#allocation4]
    $region41: #{tpu_custom_call.1} parent=1 // pred_fallthru
      _
    // Predicated region
    $region42: #{tpu_custom_call.1} parent=1 // pred_check
      _
    $region43: #{tpu_custom_call.1} parent=1 // pred_check_branch
      %853 = sbr.rel (0) target = $region45
    $region44: #{tpu_custom_call.1} parent=1 // pred_region
      %855 = dma.done [#allocation4], 128
    $region45: #{tpu_custom_call.1} parent=1 // pred_fallthru
      _
    %856 = vsyncpa [#allocation3], 1
    %857 = vsyncpa [#allocation6], 1
    %858 = vsyncpa [#allocation4], 1

</llo_original>
